<compile_context>
chip_gen: v6e
topology: v6e:2x2x1
jax: 0.10.0
libtpu: 0.0.40
codegen_flags: <defaults>
</compile_context>

<pallas_src>
import functools

import jax
import jax.numpy as jnp
from jax.experimental import pallas as pl
from jax.experimental.pallas import tpu as pltpu

_EPS = 1e-5          # nn.BatchNorm2d default
_NEG_SLOPE = 0.01    # F.leaky_relu default

# (B, O, K) x (B, K, N) -> (B, O, N); batch dim 0, contract lhs dim 2 / rhs dim 1.
_BATCH_MM_DIMS = (((2,), (1,)), ((0,), (0,)))


def _bmm(w, h):
    """Batched matmul on the MXU with f32 accumulation (operands may be bf16)."""
    return jax.lax.dot_general(
        w, h, dimension_numbers=_BATCH_MM_DIMS,
        preferred_element_type=jnp.float32)


def _batchnorm(h):
    """Training-mode BatchNorm (gamma=1, beta=0) on (B, C, N), stats over (B, N).

    Single-pass biased statistics: var = E[h^2] - E[h]^2.  One sweep over the
    activation instead of three; slightly less numerically stable than the
    two-pass form but fine at the ~unit magnitudes seen here.
    """
    inv_n = 1.0 / (h.shape[0] * h.shape[2])
    s = jnp.sum(h, axis=(0, 2), keepdims=True)
    ss = jnp.sum(h * h, axis=(0, 2), keepdims=True)
    mean = s * inv_n
    var = jnp.maximum(ss * inv_n - mean * mean, 0.0)
    return (h - mean) * jax.lax.rsqrt(var + _EPS)


def _leaky_relu(h):
    return jnp.where(h > 0, h, _NEG_SLOPE * h)


def _shift_lanes(a, s):
    """result[..., n] = a[..., n + s], zero outside the valid range. s: python int."""
    if s == 0:
        return a
    b, c, n = a.shape
    if s > 0:
        pad = jnp.zeros((b, c, s), a.dtype)
        return jnp.concatenate([a[:, :, s:], pad], axis=2)
    pad = jnp.zeros((b, c, -s), a.dtype)
    return jnp.concatenate([pad, a[:, :, :n + s]], axis=2)


def _bottleneck_kernel(x_ref, w1_ref, w2_ref, w3_ref, out_ref, *, residual, W):
    B, Cin, HW = x_ref.shape
    Cmid = w1_ref.shape[0]
    Cout = w3_ref.shape[0]

    x = x_ref[...]                                           # (B, Cin, HW) f32

    # ---- conv1 (1x1) + bn1 + leaky_relu --------------------------------
    h1 = _bmm(jnp.broadcast_to(w1_ref[...], (B, Cmid, Cin)),
              x.astype(jnp.bfloat16))                        # (B, Cmid, HW) f32
    h1 = _leaky_relu(_batchnorm(h1))

    # ---- conv2 (3x3, pad=1): single fused im2col matmul, K = 9*Cmid -----
    # Each tap is a lane shift of the flattened H*W axis.  Zero-fill of the
    # shift handles the top/bottom out-of-range rows; pre-zeroing the source
    # column that would wrap across a row boundary handles the left/right
    # image edge for the dx=0 / dx=2 taps (only 2 full-array selects total).
    h1b = h1.astype(jnp.bfloat16)
    w_pos = jax.lax.broadcasted_iota(jnp.int32, (1, 1, HW), 2) % W
    src = {
        0: jnp.where(w_pos < W - 1, h1b, 0.0),   # taps reading column w-1
        1: h1b,                                  # taps reading column w
        2: jnp.where(w_pos > 0, h1b, 0.0),       # taps reading column w+1
    }
    taps = [_shift_lanes(src[dx], (dy - 1) * W + (dx - 1))
            for dy in range(3) for dx in range(3)]
    patches = jnp.concatenate(taps, axis=1)                  # (B, 9*Cmid, HW) bf16
    h2 = _bmm(jnp.broadcast_to(w2_ref[...], (B, Cmid, 9 * Cmid)), patches)
    h2 = _leaky_relu(_batchnorm(h2))

    # ---- conv3 (1x1) + bn3 ----------------------------------------------
    h3 = _bmm(jnp.broadcast_to(w3_ref[...], (B, Cout, Cmid)),
              h2.astype(jnp.bfloat16))                       # (B, Cout, HW) f32
    h3 = _batchnorm(h3)

    if residual:
        h3 = x + h3
    out_ref[...] = h3.astype(out_ref.dtype)


def bottleneck_forward(x_nchw, w1, w2, w3):
    """x_nchw: (B, Cin, H, W).  Weights in PyTorch layout:
       w1: (Cmid, Cin, 1, 1), w2: (Cmid, Cmid, 3, 3), w3: (Cout, Cmid, 1, 1)."""
    B, Cin, H, W = x_nchw.shape
    Cmid = w1.shape[0]
    Cout = w3.shape[0]
    residual = (Cin == Cout)

    # Free reshapes only (no transposes of the activation).
    x = x_nchw.reshape(B, Cin, H * W).astype(jnp.float32)
    w1k = w1.reshape(Cmid, Cin).astype(jnp.bfloat16)                     # (O, I)
    # (O, I, kh, kw) -> (O, kh, kw, I) -> (O, 9*I); row order (dy, dx, cin)
    # matches the tap concatenation order in the kernel.
    w2k = jnp.transpose(w2, (0, 2, 3, 1)).reshape(Cmid, 9 * Cmid).astype(jnp.bfloat16)
    w3k = w3.reshape(Cout, Cmid).astype(jnp.bfloat16)

    vmem = pl.BlockSpec(memory_space=pltpu.MemorySpace.VMEM)
    out = pl.pallas_call(
        functools.partial(_bottleneck_kernel, residual=residual, W=W),
        out_shape=jax.ShapeDtypeStruct((B, Cout, H * W), jnp.float32),
        in_specs=[vmem, vmem, vmem, vmem],
        out_specs=vmem,
        compiler_params=pltpu.CompilerParams(
            vmem_limit_bytes=32 * 1024 * 1024),
    )(x, w1k, w2k, w3k)
    return out.reshape(B, Cout, H, W)


def _reference(x_nchw, w1, w2, w3):
    """Pure-JAX reference (XLA convs, f32) for a numerics sanity check."""
    def conv(x, w, pad):
        return jax.lax.conv_general_dilated(
            x, w, window_strides=(1, 1), padding=[(pad, pad), (pad, pad)],
            dimension_numbers=("NCHW", "OIHW", "NCHW"),
            precision=jax.lax.Precision.HIGHEST)

    def bn(h):
        mean = jnp.mean(h, axis=(0, 2, 3), keepdims=True)
        var = jnp.mean((h - mean) ** 2, axis=(0, 2, 3), keepdims=True)
        return (h - mean) * jax.lax.rsqrt(var + _EPS)

    def lrelu(h):
        return jnp.where(h > 0, h, _NEG_SLOPE * h)

    out = lrelu(bn(conv(x_nchw, w1, 0)))
    out = lrelu(bn(conv(out, w2, 1)))
    out = bn(conv(out, w3, 0))
    if x_nchw.shape[1] == w3.shape[0]:
        out = x_nchw + out
    return out


if __name__ == "__main__":
    B, Cin, H, W = 2, 4, 16, 16
    Cout = Cin              # in_channels == out_channels -> residual path exercised
    Cmid = 2 * Cin

    key = jax.random.PRNGKey(0)
    k_x, k1, k2, k3 = jax.random.split(key, 4)

    x = jax.random.normal(k_x, (B, Cin, H, W), jnp.float32)
    # Kaiming-normal (fan_in, gain=sqrt(2)) as in the module __init__.
    w1 = jax.random.normal(k1, (Cmid, Cin, 1, 1), jnp.float32) * (2.0 / (Cin * 1 * 1)) ** 0.5
    w2 = jax.random.normal(k2, (Cmid, Cmid, 3, 3), jnp.float32) * (2.0 / (Cmid * 3 * 3)) ** 0.5
    w3 = jax.random.normal(k3, (Cout, Cmid, 1, 1), jnp.float32) * (2.0 / (Cmid * 1 * 1)) ** 0.5

    out = jax.block_until_ready(bottleneck_forward(x, w1, w2, w3))
    ref = _reference(x, w1, w2, w3)

    assert out.shape == (B, Cout, H, W)
    # bf16 matmul operands (f32 accumulation) per the TPU perf guidance -> a
    # slightly looser tolerance than a pure-f32 comparison would need.
    max_err = float(jnp.max(jnp.abs(out - ref)))
    assert jnp.allclose(out, ref, atol=5e-2, rtol=5e-2), f"max abs err = {max_err}"
    print("KERNEL_OK")
</pallas_src>

<mosaic_0001>
module attributes {stable_mosaic.version = 11 : i64} {
  func.func @_bottleneck_kernel(%arg0: memref<2x4x256xf32, #tpu.memory_space<vmem>>, %arg1: memref<8x4xbf16, #tpu.memory_space<vmem>>, %arg2: memref<8x72xbf16, #tpu.memory_space<vmem>>, %arg3: memref<4x8xbf16, #tpu.memory_space<vmem>>, %arg4: memref<2x4x256xf32, #tpu.memory_space<vmem>>) attributes {dimension_semantics = [], scalar_prefetch = 0 : i64, scratch_operands = 0 : i64, tpu.core_type = #tpu.core_type<tc>} {
    %c0 = arith.constant 0 : index
    %c0_0 = arith.constant 0 : index
    %c0_1 = arith.constant 0 : index
    %0 = vector.load %arg0[%c0, %c0_0, %c0_1] : memref<2x4x256xf32, #tpu.memory_space<vmem>>, vector<2x4x256xf32>
    %c0_2 = arith.constant 0 : index
    %c0_3 = arith.constant 0 : index
    %1 = vector.load %arg1[%c0_2, %c0_3] : memref<8x4xbf16, #tpu.memory_space<vmem>>, vector<8x4xbf16>
    %2 = vector.shape_cast %1 : vector<8x4xbf16> to vector<1x8x4xbf16>
    %3 = vector.broadcast %2 : vector<1x8x4xbf16> to vector<2x8x4xbf16>
    %4 = arith.truncf %0 : vector<2x4x256xf32> to vector<2x4x256xbf16>
    %cst = arith.constant dense<0.000000e+00> : vector<2x8x256xf32>
    %5 = tpu.matmul %3, %4, %cst {dimension_numbers = #tpu.dot_dimension_numbers<[2], [1], [1], [2], [0, 0, 0, 1, 1, 2], [0], [0]>} : vector<2x8x4xbf16>, vector<2x4x256xbf16>, vector<2x8x256xf32> -> vector<2x8x256xf32>
    %cst_4 = arith.constant dense<0.000000e+00> : vector<8xf32>
    %6 = vector.multi_reduction <add>, %5, %cst_4 [0, 2] : vector<2x8x256xf32> to vector<8xf32>
    %7 = vector.shape_cast %6 : vector<8xf32> to vector<1x8x1xf32>
    %8 = arith.mulf %5, %5 : vector<2x8x256xf32>
    %cst_5 = arith.constant dense<0.000000e+00> : vector<8xf32>
    %9 = vector.multi_reduction <add>, %8, %cst_5 [0, 2] : vector<2x8x256xf32> to vector<8xf32>
    %10 = vector.shape_cast %9 : vector<8xf32> to vector<1x8x1xf32>
    %cst_6 = arith.constant 0.001953125 : f32
    %11 = vector.broadcast %cst_6 : f32 to vector<1x8x1xf32>
    %12 = arith.mulf %7, %11 : vector<1x8x1xf32>
    %cst_7 = arith.constant 0.001953125 : f32
    %13 = vector.broadcast %cst_7 : f32 to vector<1x8x1xf32>
    %14 = arith.mulf %10, %13 : vector<1x8x1xf32>
    %15 = arith.mulf %12, %12 : vector<1x8x1xf32>
    %16 = arith.subf %14, %15 : vector<1x8x1xf32>
    %cst_8 = arith.constant 0.000000e+00 : f32
    %17 = vector.broadcast %cst_8 : f32 to vector<1x8x1xf32>
    %18 = arith.maximumf %16, %17 : vector<1x8x1xf32>
    %19 = vector.broadcast %12 : vector<1x8x1xf32> to vector<2x8x256xf32>
    %20 = arith.subf %5, %19 : vector<2x8x256xf32>
    %cst_9 = arith.constant 9.99999974E-6 : f32
    %21 = vector.broadcast %cst_9 : f32 to vector<1x8x1xf32>
    %22 = arith.addf %18, %21 : vector<1x8x1xf32>
    %23 = math.rsqrt %22 : vector<1x8x1xf32>
    %24 = vector.broadcast %23 : vector<1x8x1xf32> to vector<2x8x256xf32>
    %25 = arith.mulf %20, %24 : vector<2x8x256xf32>
    %cst_10 = arith.constant 0.000000e+00 : f32
    %26 = vector.broadcast %cst_10 : f32 to vector<2x8x256xf32>
    %27 = arith.cmpf ogt, %25, %26 : vector<2x8x256xf32>
    %cst_11 = arith.constant 0.00999999977 : f32
    %28 = vector.broadcast %cst_11 : f32 to vector<2x8x256xf32>
    %29 = arith.mulf %28, %25 : vector<2x8x256xf32>
    %30 = arith.select %27, %25, %29 : vector<2x8x256xi1>, vector<2x8x256xf32>
    %31 = arith.truncf %30 : vector<2x8x256xf32> to vector<2x8x256xbf16>
    %32 = tpu.iota {dimensions = array<i32: 2>} : vector<1x1x256xi32>
    %c16_i32 = arith.constant 16 : i32
    %c0_i32 = arith.constant 0 : i32
    %33 = arith.cmpi eq, %c16_i32, %c0_i32 : i32
    %c1_i32 = arith.constant 1 : i32
    %34 = arith.select %33, %c1_i32, %c16_i32 : i32
    %35 = vector.broadcast %34 : i32 to vector<1x1x256xi32>
    %36 = arith.remsi %32, %35 : vector<1x1x256xi32>
    %c0_i32_12 = arith.constant 0 : i32
    %37 = vector.broadcast %c0_i32_12 : i32 to vector<1x1x256xi32>
    %38 = arith.cmpi ne, %36, %37 : vector<1x1x256xi32>
    %c0_i32_13 = arith.constant 0 : i32
    %39 = vector.broadcast %c0_i32_13 : i32 to vector<1x1x256xi32>
    %40 = arith.cmpi slt, %36, %39 : vector<1x1x256xi32>
    %c0_i32_14 = arith.constant 0 : i32
    %41 = arith.cmpi slt, %34, %c0_i32_14 : i32
    %42 = vector.broadcast %41 : i1 to vector<1x1x256xi1>
    %43 = vector.broadcast %42 : vector<1x1x256xi1> to vector<1x1x256xi1>
    %44 = arith.xori %40, %43 : vector<1x1x256xi1>
    %45 = arith.andi %44, %38 : vector<1x1x256xi1>
    %46 = vector.broadcast %34 : i32 to vector<1x1x256xi32>
    %47 = arith.addi %36, %46 : vector<1x1x256xi32>
    %48 = arith.select %45, %47, %36 : vector<1x1x256xi1>, vector<1x1x256xi32>
    %c15_i32 = arith.constant 15 : i32
    %49 = vector.broadcast %c15_i32 : i32 to vector<1x1x256xi32>
    %50 = arith.cmpi slt, %48, %49 : vector<1x1x256xi32>
    %cst_15 = arith.constant 0.000000e+00 : f32
    %51 = arith.truncf %cst_15 : f32 to bf16
    %52 = vector.shape_cast %50 : vector<1x1x256xi1> to vector<1x1x256xi1>
    %53 = vector.broadcast %52 : vector<1x1x256xi1> to vector<2x8x256xi1>
    %54 = vector.broadcast %51 : bf16 to vector<2x8x256xbf16>
    %55 = arith.select %53, %31, %54 : vector<2x8x256xi1>, vector<2x8x256xbf16>
    %c0_i32_16 = arith.constant 0 : i32
    %56 = vector.broadcast %c0_i32_16 : i32 to vector<1x1x256xi32>
    %57 = arith.cmpi sgt, %48, %56 : vector<1x1x256xi32>
    %cst_17 = arith.constant 0.000000e+00 : f32
    %58 = arith.truncf %cst_17 : f32 to bf16
    %59 = vector.shape_cast %57 : vector<1x1x256xi1> to vector<1x1x256xi1>
    %60 = vector.broadcast %59 : vector<1x1x256xi1> to vector<2x8x256xi1>
    %61 = vector.broadcast %58 : bf16 to vector<2x8x256xbf16>
    %62 = arith.select %60, %31, %61 : vector<2x8x256xi1>, vector<2x8x256xbf16>
    %cst_18 = arith.constant 0.000000e+00 : bf16
    %63 = vector.broadcast %cst_18 : bf16 to vector<2x8x17xbf16>
    %64 = vector.extract_strided_slice %55 {offsets = [0, 0, 0], sizes = [2, 8, 239], strides = [1, 1, 1]} : vector<2x8x256xbf16> to vector<2x8x239xbf16>
    %65 = tpu.concatenate %63, %64 in 2 : vector<2x8x17xbf16>, vector<2x8x239xbf16> -> vector<2x8x256xbf16>
    %cst_19 = arith.constant 0.000000e+00 : bf16
    %66 = vector.broadcast %cst_19 : bf16 to vector<2x8x16xbf16>
    %67 = vector.extract_strided_slice %31 {offsets = [0, 0, 0], sizes = [2, 8, 240], strides = [1, 1, 1]} : vector<2x8x256xbf16> to vector<2x8x240xbf16>
    %68 = tpu.concatenate %66, %67 in 2 : vector<2x8x16xbf16>, vector<2x8x240xbf16> -> vector<2x8x256xbf16>
    %cst_20 = arith.constant 0.000000e+00 : bf16
    %69 = vector.broadcast %cst_20 : bf16 to vector<2x8x15xbf16>
    %70 = vector.extract_strided_slice %62 {offsets = [0, 0, 0], sizes = [2, 8, 241], strides = [1, 1, 1]} : vector<2x8x256xbf16> to vector<2x8x241xbf16>
    %71 = tpu.concatenate %69, %70 in 2 : vector<2x8x15xbf16>, vector<2x8x241xbf16> -> vector<2x8x256xbf16>
    %cst_21 = arith.constant 0.000000e+00 : bf16
    %72 = vector.broadcast %cst_21 : bf16 to vector<2x8x1xbf16>
    %73 = vector.extract_strided_slice %55 {offsets = [0, 0, 0], sizes = [2, 8, 255], strides = [1, 1, 1]} : vector<2x8x256xbf16> to vector<2x8x255xbf16>
    %74 = tpu.concatenate %72, %73 in 2 : vector<2x8x1xbf16>, vector<2x8x255xbf16> -> vector<2x8x256xbf16>
    %cst_22 = arith.constant 0.000000e+00 : bf16
    %75 = vector.broadcast %cst_22 : bf16 to vector<2x8x1xbf16>
    %76 = vector.extract_strided_slice %62 {offsets = [0, 0, 1], sizes = [2, 8, 255], strides = [1, 1, 1]} : vector<2x8x256xbf16> to vector<2x8x255xbf16>
    %77 = tpu.concatenate %76, %75 in 2 : vector<2x8x255xbf16>, vector<2x8x1xbf16> -> vector<2x8x256xbf16>
    %cst_23 = arith.constant 0.000000e+00 : bf16
    %78 = vector.broadcast %cst_23 : bf16 to vector<2x8x15xbf16>
    %79 = vector.extract_strided_slice %55 {offsets = [0, 0, 15], sizes = [2, 8, 241], strides = [1, 1, 1]} : vector<2x8x256xbf16> to vector<2x8x241xbf16>
    %80 = tpu.concatenate %79, %78 in 2 : vector<2x8x241xbf16>, vector<2x8x15xbf16> -> vector<2x8x256xbf16>
    %cst_24 = arith.constant 0.000000e+00 : bf16
    %81 = vector.broadcast %cst_24 : bf16 to vector<2x8x16xbf16>
    %82 = vector.extract_strided_slice %31 {offsets = [0, 0, 16], sizes = [2, 8, 240], strides = [1, 1, 1]} : vector<2x8x256xbf16> to vector<2x8x240xbf16>
    %83 = tpu.concatenate %82, %81 in 2 : vector<2x8x240xbf16>, vector<2x8x16xbf16> -> vector<2x8x256xbf16>
    %cst_25 = arith.constant 0.000000e+00 : bf16
    %84 = vector.broadcast %cst_25 : bf16 to vector<2x8x17xbf16>
    %85 = vector.extract_strided_slice %62 {offsets = [0, 0, 17], sizes = [2, 8, 239], strides = [1, 1, 1]} : vector<2x8x256xbf16> to vector<2x8x239xbf16>
    %86 = tpu.concatenate %85, %84 in 2 : vector<2x8x239xbf16>, vector<2x8x17xbf16> -> vector<2x8x256xbf16>
    %87 = tpu.concatenate %65, %68, %71, %74, %31, %77, %80, %83, %86 in 1 : vector<2x8x256xbf16>, vector<2x8x256xbf16>, vector<2x8x256xbf16>, vector<2x8x256xbf16>, vector<2x8x256xbf16>, vector<2x8x256xbf16>, vector<2x8x256xbf16>, vector<2x8x256xbf16>, vector<2x8x256xbf16> -> vector<2x72x256xbf16>
    %c0_26 = arith.constant 0 : index
    %c0_27 = arith.constant 0 : index
    %88 = vector.load %arg2[%c0_26, %c0_27] : memref<8x72xbf16, #tpu.memory_space<vmem>>, vector<8x72xbf16>
    %89 = vector.shape_cast %88 : vector<8x72xbf16> to vector<1x8x72xbf16>
    %90 = vector.broadcast %89 : vector<1x8x72xbf16> to vector<2x8x72xbf16>
    %cst_28 = arith.constant dense<0.000000e+00> : vector<2x8x256xf32>
    %91 = tpu.matmul %90, %87, %cst_28 {dimension_numbers = #tpu.dot_dimension_numbers<[2], [1], [1], [2], [0, 0, 0, 1, 1, 2], [0], [0]>} : vector<2x8x72xbf16>, vector<2x72x256xbf16>, vector<2x8x256xf32> -> vector<2x8x256xf32>
    %cst_29 = arith.constant dense<0.000000e+00> : vector<8xf32>
    %92 = vector.multi_reduction <add>, %91, %cst_29 [0, 2] : vector<2x8x256xf32> to vector<8xf32>
    %93 = vector.shape_cast %92 : vector<8xf32> to vector<1x8x1xf32>
    %94 = arith.mulf %91, %91 : vector<2x8x256xf32>
    %cst_30 = arith.constant dense<0.000000e+00> : vector<8xf32>
    %95 = vector.multi_reduction <add>, %94, %cst_30 [0, 2] : vector<2x8x256xf32> to vector<8xf32>
    %96 = vector.shape_cast %95 : vector<8xf32> to vector<1x8x1xf32>
    %cst_31 = arith.constant 0.001953125 : f32
    %97 = vector.broadcast %cst_31 : f32 to vector<1x8x1xf32>
    %98 = arith.mulf %93, %97 : vector<1x8x1xf32>
    %cst_32 = arith.constant 0.001953125 : f32
    %99 = vector.broadcast %cst_32 : f32 to vector<1x8x1xf32>
    %100 = arith.mulf %96, %99 : vector<1x8x1xf32>
    %101 = arith.mulf %98, %98 : vector<1x8x1xf32>
    %102 = arith.subf %100, %101 : vector<1x8x1xf32>
    %cst_33 = arith.constant 0.000000e+00 : f32
    %103 = vector.broadcast %cst_33 : f32 to vector<1x8x1xf32>
    %104 = arith.maximumf %102, %103 : vector<1x8x1xf32>
    %105 = vector.broadcast %98 : vector<1x8x1xf32> to vector<2x8x256xf32>
    %106 = arith.subf %91, %105 : vector<2x8x256xf32>
    %cst_34 = arith.constant 9.99999974E-6 : f32
    %107 = vector.broadcast %cst_34 : f32 to vector<1x8x1xf32>
    %108 = arith.addf %104, %107 : vector<1x8x1xf32>
    %109 = math.rsqrt %108 : vector<1x8x1xf32>
    %110 = vector.broadcast %109 : vector<1x8x1xf32> to vector<2x8x256xf32>
    %111 = arith.mulf %106, %110 : vector<2x8x256xf32>
    %cst_35 = arith.constant 0.000000e+00 : f32
    %112 = vector.broadcast %cst_35 : f32 to vector<2x8x256xf32>
    %113 = arith.cmpf ogt, %111, %112 : vector<2x8x256xf32>
    %cst_36 = arith.constant 0.00999999977 : f32
    %114 = vector.broadcast %cst_36 : f32 to vector<2x8x256xf32>
    %115 = arith.mulf %114, %111 : vector<2x8x256xf32>
    %116 = arith.select %113, %111, %115 : vector<2x8x256xi1>, vector<2x8x256xf32>
    %c0_37 = arith.constant 0 : index
    %c0_38 = arith.constant 0 : index
    %117 = vector.load %arg3[%c0_37, %c0_38] : memref<4x8xbf16, #tpu.memory_space<vmem>>, vector<4x8xbf16>
    %118 = vector.shape_cast %117 : vector<4x8xbf16> to vector<1x4x8xbf16>
    %119 = vector.broadcast %118 : vector<1x4x8xbf16> to vector<2x4x8xbf16>
    %120 = arith.truncf %116 : vector<2x8x256xf32> to vector<2x8x256xbf16>
    %cst_39 = arith.constant dense<0.000000e+00> : vector<2x4x256xf32>
    %121 = tpu.matmul %119, %120, %cst_39 {dimension_numbers = #tpu.dot_dimension_numbers<[2], [1], [1], [2], [0, 0, 0, 1, 1, 2], [0], [0]>} : vector<2x4x8xbf16>, vector<2x8x256xbf16>, vector<2x4x256xf32> -> vector<2x4x256xf32>
    %cst_40 = arith.constant dense<0.000000e+00> : vector<4xf32>
    %122 = vector.multi_reduction <add>, %121, %cst_40 [0, 2] : vector<2x4x256xf32> to vector<4xf32>
    %123 = vector.shape_cast %122 : vector<4xf32> to vector<1x4x1xf32>
    %124 = arith.mulf %121, %121 : vector<2x4x256xf32>
    %cst_41 = arith.constant dense<0.000000e+00> : vector<4xf32>
    %125 = vector.multi_reduction <add>, %124, %cst_41 [0, 2] : vector<2x4x256xf32> to vector<4xf32>
    %126 = vector.shape_cast %125 : vector<4xf32> to vector<1x4x1xf32>
    %cst_42 = arith.constant 0.001953125 : f32
    %127 = vector.broadcast %cst_42 : f32 to vector<1x4x1xf32>
    %128 = arith.mulf %123, %127 : vector<1x4x1xf32>
    %cst_43 = arith.constant 0.001953125 : f32
    %129 = vector.broadcast %cst_43 : f32 to vector<1x4x1xf32>
    %130 = arith.mulf %126, %129 : vector<1x4x1xf32>
    %131 = arith.mulf %128, %128 : vector<1x4x1xf32>
    %132 = arith.subf %130, %131 : vector<1x4x1xf32>
    %cst_44 = arith.constant 0.000000e+00 : f32
    %133 = vector.broadcast %cst_44 : f32 to vector<1x4x1xf32>
    %134 = arith.maximumf %132, %133 : vector<1x4x1xf32>
    %135 = vector.broadcast %128 : vector<1x4x1xf32> to vector<2x4x256xf32>
    %136 = arith.subf %121, %135 : vector<2x4x256xf32>
    %cst_45 = arith.constant 9.99999974E-6 : f32
    %137 = vector.broadcast %cst_45 : f32 to vector<1x4x1xf32>
    %138 = arith.addf %134, %137 : vector<1x4x1xf32>
    %139 = math.rsqrt %138 : vector<1x4x1xf32>
    %140 = vector.broadcast %139 : vector<1x4x1xf32> to vector<2x4x256xf32>
    %141 = arith.mulf %136, %140 : vector<2x4x256xf32>
    %142 = arith.addf %0, %141 : vector<2x4x256xf32>
    %c0_46 = arith.constant 0 : index
    %c0_47 = arith.constant 0 : index
    %c0_48 = arith.constant 0 : index
    %143 = vector.load %arg4[%c0_46, %c0_47, %c0_48] : memref<2x4x256xf32, #tpu.memory_space<vmem>>, vector<2x4x256xf32>
    tpu.vector_store %arg4[%c0_46, %c0_47, %c0_48], %142 {strides = array<i32>} : memref<2x4x256xf32, #tpu.memory_space<vmem>>, vector<2x4x256xf32>,
    return
  }
}

</mosaic_0001>

<llo_original>
// kernel: tpu_custom_call.1
$region0: #{tpu_custom_call.1}
  #allocation0 [shape = 'u32[]', space=smem, size = 0x4, offset = 0x4, fixed_abs, tag = 'smem constant byte address 0x4 - core index']
  #allocation1 [shape = 'u32[144,128]{1,0:T(1,128)}', space=vmem, size = 0x12000, scoped, tag = 'internal scratch']
  %s0 = inlined_call_operand.hbm [shape: f32[2,4,256], index: 0, kind: input, shape index: {}]
  %s1 = inlined_call_operand.vmem [shape: bf16[8,4], index: 1, kind: input, shape index: {}]
  %s2 = inlined_call_operand.vmem [shape: bf16[8,72], index: 2, kind: input, shape index: {}]
  %s3 = inlined_call_operand.vmem [shape: bf16[4,8], index: 3, kind: input, shape index: {}]
  %s4 = inlined_call_operand.hbm [shape: f32[2,4,256], index: 4, kind: output, shape index: {}]
  %s5 = sld [smem:[#allocation0]]
  $region30: #{tpu_custom_call.1} parent=0
    _
  %s7 = ssub.s32 1, %s5
  %s8 = scalar_select 0, %s7, %s5
  $region1: #{tpu_custom_call.1} parent=0
    #allocation2 [shape = 'u8[8192]{0}', space=vmem, size = 0x2000, scoped, tag = 'input window, operand 0, single buffered']
    #allocation3 [shape = 's32[1]{0}', space=sflag, size = 0x4, scoped, tag = 'scoped memory for tpu_custom_call.1']
    #allocation4 [shape = 's32[1]{0}', space=sflag, size = 0x4, scoped, tag = 'scoped memory for tpu_custom_call.1']
    #allocation5 [shape = 'u8[8192]{0}', space=vmem, size = 0x2000, scoped, tag = 'output window, operand 0, single buffered']
    %9 = vsyncpa [#allocation3], 0
    %10 = vsyncpa [#allocation4], 0
    // Predicated region
    $region2: #{tpu_custom_call.1} parent=1 // pred_check
      _
    $region3: #{tpu_custom_call.1} parent=1 // pred_check_branch
      %12 = sbr.rel (0) target = $region5
    $region4: #{tpu_custom_call.1} parent=1 // pred_region
      %s14 = ssub.s32 256, 256
      %15 = vsyncadd [#allocation3], %s14
      %s16 = sshll.u32 [#allocation2], 4
      %s17 = int_to_ptr.vmem [resolvable:$true] %s16
      %22 = dma.hbm_to_vmem [thread:$0]  %s0, 256, %s17, [#allocation3], 128, 128, 8
    $region5: #{tpu_custom_call.1} parent=1 // pred_fallthru
      _
    // Predicated region
    $region6: #{tpu_custom_call.1} parent=1 // pred_check
      _
    $region7: #{tpu_custom_call.1} parent=1 // pred_check_branch
      %24 = sbr.rel (0) target = $region9
    $region8: #{tpu_custom_call.1} parent=1 // pred_region
      _
    $region9: #{tpu_custom_call.1} parent=1 // pred_fallthru
      _
    // Predicated region
    $region10: #{tpu_custom_call.1} parent=1 // pred_check
      _
    $region11: #{tpu_custom_call.1} parent=1 // pred_check_branch
      %26 = sbr.rel (0) target = $region13
    $region12: #{tpu_custom_call.1} parent=1 // pred_region
      _
    $region13: #{tpu_custom_call.1} parent=1 // pred_fallthru
      _
    // Predicated region
    $region14: #{tpu_custom_call.1} parent=1 // pred_check
      _
    $region15: #{tpu_custom_call.1} parent=1 // pred_check_branch
      %28 = sbr.rel (0) target = $region17
    $region16: #{tpu_custom_call.1} parent=1 // pred_region
      _
    $region17: #{tpu_custom_call.1} parent=1 // pred_fallthru
      _
    // Predicated region
    $region18: #{tpu_custom_call.1} parent=1 // pred_check
      _
    $region19: #{tpu_custom_call.1} parent=1 // pred_check_branch
      %30 = sbr.rel (0) target = $region21
    $region20: #{tpu_custom_call.1} parent=1 // pred_region
      %31 = dma.done [#allocation3], 256
    $region21: #{tpu_custom_call.1} parent=1 // pred_fallthru
      _
    %v35 = vld [vmem:[#allocation2] sm:$0xff]
    %v36 = vld [vmem:[#allocation2 + $0x8] sm:$0xff]
    %v37 = vld [vmem:[%s1] sm:$0xf]
    %v40 = vcombine.high %v35, %v35
    %v41 = vcombine.high %v36, %v36
    %v44 = vpack.c.bf16 %v35, %v35
    %v45 = vpack.c.bf16 %v40, %v40
    %v46 = vpack.c.bf16 %v36, %v36
    %v47 = vpack.c.bf16 %v41, %v41
    %vm48 = vcmask 31744
    %v50 = vsel %vm48, %v37, 0
    %vm52 = vcmask 1041408
    %v54 = vsel %vm52, %v44, 0
    %v57 = vsel %vm52, %v45, 0
    %59 = vmatprep.subr.bf16.mxu0 0
    %60 = vmatpush1.bf16.msra.mxu0 0
    %61 = vmatprep.subr.bf16.mxu0 0
    %62 = vmatpush1.bf16.msra.mxu0 0
    %63 = vmatprep.subr.bf16.mxu0 0
    %64 = vmatpush1.bf16.msra.mxu0 0
    %65 = vmatprep.subr.bf16.mxu0 0
    %66 = vmatpush1.bf16.msra.mxu0 0
    %67 = vmatprep.subr.bf16.mxu0 0
    %68 = vmatpush1.bf16.msra.mxu0 0
    %69 = vmatprep.subr.bf16.mxu0 0
    %70 = vmatpush1.bf16.msra.mxu0 0
    %71 = vmatprep.subr.bf16.mxu0 0
    %72 = vmatpush1.bf16.msra.mxu0 0
    %73 = vmatprep.subr.bf16.mxu0 %v57
    %74 = vmatpush1.bf16.msra.mxu0 %v54
    %75 = vmatprep.subr.bf16.mxu0 0
    %76 = vmatpush2.bf16.msra.mxu0 0
    %77 = vmatprep.subr.bf16.mxu0 0
    %78 = vmatpush2.bf16.msra.mxu0 0
    %79 = vmatprep.subr.bf16.mxu0 0
    %80 = vmatpush2.bf16.msra.mxu0 0
    %81 = vmatprep.subr.bf16.mxu0 0
    %82 = vmatpush2.bf16.msra.mxu0 0
    %83 = vmatprep.subr.bf16.mxu0 0
    %84 = vmatpush2.bf16.msra.mxu0 0
    %85 = vmatprep.subr.bf16.mxu0 0
    %86 = vmatpush2.bf16.msra.mxu0 0
    %87 = vmatprep.subr.bf16.mxu0 0
    %88 = vmatpush2.bf16.msra.mxu0 0
    %89 = vmatprep.subr.bf16.mxu0 0
    %90 = vmatpush2.bf16.msra.mxu0 0
    %91 = vmatprep.mubr.bf16.mxu0 0
    %92 = vmatmul.mubr.bf16.gmra.mxu0 %v50
    %v93 = vpop.f32.mrf.mxu0
    %v94 = vadd.f32 0.0, %v93
    %v95 = vpop.f32.mrf.mxu0
    %v96 = vadd.f32 0.0, %v95
    %v97 = vpop.f32.mrf.mxu0
    %v98 = vpop.f32.mrf.mxu0
    %99 = vdwg.mxu0
    %v101 = vsel %vm52, %v46, 0
    %v104 = vsel %vm52, %v47, 0
    %106 = vmatprep.subr.bf16.mxu0 0
    %107 = vmatpush1.bf16.msra.mxu0 0
    %108 = vmatprep.subr.bf16.mxu0 0
    %109 = vmatpush1.bf16.msra.mxu0 0
    %110 = vmatprep.subr.bf16.mxu0 0
    %111 = vmatpush1.bf16.msra.mxu0 0
    %112 = vmatprep.subr.bf16.mxu0 0
    %113 = vmatpush1.bf16.msra.mxu0 0
    %114 = vmatprep.subr.bf16.mxu0 0
    %115 = vmatpush1.bf16.msra.mxu0 0
    %116 = vmatprep.subr.bf16.mxu0 0
    %117 = vmatpush1.bf16.msra.mxu0 0
    %118 = vmatprep.subr.bf16.mxu0 0
    %119 = vmatpush1.bf16.msra.mxu0 0
    %120 = vmatprep.subr.bf16.mxu0 %v104
    %121 = vmatpush1.bf16.msra.mxu0 %v101
    %122 = vmatprep.subr.bf16.mxu0 0
    %123 = vmatpush2.bf16.msra.mxu0 0
    %124 = vmatprep.subr.bf16.mxu0 0
    %125 = vmatpush2.bf16.msra.mxu0 0
    %126 = vmatprep.subr.bf16.mxu0 0
    %127 = vmatpush2.bf16.msra.mxu0 0
    %128 = vmatprep.subr.bf16.mxu0 0
    %129 = vmatpush2.bf16.msra.mxu0 0
    %130 = vmatprep.subr.bf16.mxu0 0
    %131 = vmatpush2.bf16.msra.mxu0 0
    %132 = vmatprep.subr.bf16.mxu0 0
    %133 = vmatpush2.bf16.msra.mxu0 0
    %134 = vmatprep.subr.bf16.mxu0 0
    %135 = vmatpush2.bf16.msra.mxu0 0
    %136 = vmatprep.subr.bf16.mxu0 0
    %137 = vmatpush2.bf16.msra.mxu0 0
    %138 = vmatprep.mubr.bf16.mxu0 0
    %139 = vmatmul.mubr.bf16.gmra.mxu0 %v50
    %v140 = vpop.f32.mrf.mxu0
    %v141 = vadd.f32 0.0, %v140
    %v142 = vpop.f32.mrf.mxu0
    %v143 = vadd.f32 0.0, %v142
    %v144 = vpop.f32.mrf.mxu0
    %v145 = vpop.f32.mrf.mxu0
    %146 = vdwg.mxu0
    %v147 = vadd.f32 %v94, %v96
    %v148 = vadd.f32 %v147, %v141
    %v149 = vadd.f32 %v148, %v143
    %150 = vadd.xlane.f32.xlu0 %v149
    %v151 = vpop.xlane.xlu0 %150
    %v152 = vmul.f32 %v94, %v94
    %v153 = vmul.f32 %v96, %v96
    %v154 = vmul.f32 %v141, %v141
    %v155 = vmul.f32 %v143, %v143
    %v156 = vadd.f32 %v152, %v153
    %v157 = vadd.f32 %v156, %v154
    %v158 = vadd.f32 %v157, %v155
    %159 = vadd.xlane.f32.xlu0 %v158
    %v160 = vpop.xlane.xlu0 %159
    %v161 = vmul.f32 %v151, 0.001953125
    %v162 = vmul.f32 %v160, 0.001953125
    %v163 = vmul.f32 %v161, %v161
    %v164 = vsub.f32 %v162, %v163
    %v165 = vmax.f32 %v164, 0.0
    %v166 = vsub.f32 %v94, %v161
    %v167 = vsub.f32 %v96, %v161
    %v168 = vsub.f32 %v141, %v161
    %v169 = vsub.f32 %v143, %v161
    %v170 = vadd.f32 %v165, 1e-05
    %v171 = vrsqrt.pop %v170
    %v172 = vmul.f32 %v166, %v171
    %v173 = vmul.f32 %v167, %v171
    %v174 = vmul.f32 %v168, %v171
    %v175 = vmul.f32 %v169, %v171
    %vm176 = vcmp.gt.f32.partialorder %v172, 0.0
    %vm177 = vcmp.gt.f32.partialorder %v173, 0.0
    %vm178 = vcmp.gt.f32.partialorder %v174, 0.0
    %vm179 = vcmp.gt.f32.partialorder %v175, 0.0
    %v180 = vmul.f32 %v172, 0.01
    %v181 = vmul.f32 %v173, 0.01
    %v182 = vmul.f32 %v174, 0.01
    %v183 = vmul.f32 %v175, 0.01
    %v184 = vsel %vm176, %v172, %v180
    %v185 = vsel %vm177, %v173, %v181
    %v186 = vsel %vm178, %v174, %v182
    %v187 = vsel %vm179, %v175, %v183
    %v188 = vpack.c.bf16 %v184, %v184
    %v189 = vpack.c.bf16 %v185, %v185
    %v190 = vpack.c.bf16 %v186, %v186
    %v191 = vpack.c.bf16 %v187, %v187
    %v192 = vlaneseq
    %v193 = vand.u32 %v192, 127
    %v194 = vadd.s32 %v193, 128
    %vm195 = vcmp.lt.s32.totalorder %v193, 0
    %v196 = vsub.s32 0, %v193
    %v197 = vsel %vm195, %v196, %v193
    %v198 = vshrl.u32 %v197, 4
    %v199 = vand.u32 %v197, 15
    %v200 = vsub.s32 0, %v199
    %v201 = vsel %vm195, %v200, %v199
    %vm202 = vcmp.lt.s32.totalorder %v194, 0
    %v203 = vsub.s32 0, %v194
    %v204 = vsel %vm202, %v203, %v194
    %v205 = vshrl.u32 %v204, 4
    %v206 = vand.u32 %v204, 15
    %v207 = vsub.s32 0, %v206
    %v208 = vsel %vm202, %v207, %v206
    %vm209 = vcmp.ne.s32.totalorder %v201, 0
    %vm210 = vcmp.ne.s32.totalorder %v208, 0
    %vm211 = vcmp.lt.s32.totalorder %v201, 0
    %vm212 = vcmp.lt.s32.totalorder %v208, 0
    %vm213 = vmand %vm211, %vm209
    %vm214 = vmand %vm212, %vm210
    %v215 = vadd.s32 %v201, 16
    %v216 = vadd.s32 %v208, 16
    %v217 = vsel %vm213, %v215, %v201
    %v218 = vsel %vm214, %v216, %v208
    %vm219 = vcmp.lt.s32.totalorder %v217, 15
    %vm220 = vcmp.lt.s32.totalorder %v218, 15
    %v221 = vsel %vm219, 1, 0
    %v222 = vsel %vm220, 1, 0
    %vm223 = vcmp.eq.s32.totalorder %v221, 1
    %vm224 = vcmp.eq.s32.totalorder %v222, 1
    %vm225 = vmpackc.low %vm224, %vm223
    %v226 = vsel %vm225, 65537, 0
    %v227 = vlaneseq
    %v228 = vshrl.u32 %v227, 7
    %v229 = vsub.s32 0, %v228
    %v230 = vrot.slane %v226, %v229
    %v231 = vlaneseq
    %v232 = vshrl.u32 %v231, 7
    %v233 = vsub.s32 4, %v232
    %v234 = vrot.slane %v226, %v233
    %vm235 = vcmp.ne.s16.totalorder %v230, 0
    %vm236 = vcmp.ne.s16.totalorder %v234, 0
    %v237 = vsel %vm235, %v188, 0
    %v238 = vsel %vm236, %v189, 0
    %v239 = vsel %vm235, %v190, 0
    %v240 = vsel %vm236, %v191, 0
    %vm241 = vcmp.gt.s32.totalorder %v217, 0
    %vm242 = vcmp.gt.s32.totalorder %v218, 0
    %v243 = vsel %vm241, 1, 0
    %v244 = vsel %vm242, 1, 0
    %vm245 = vcmp.eq.s32.totalorder %v243, 1
    %vm246 = vcmp.eq.s32.totalorder %v244, 1
    %vm247 = vmpackc.low %vm246, %vm245
    %v248 = vsel %vm247, 65537, 0
    %v249 = vlaneseq
    %v250 = vshrl.u32 %v249, 7
    %v251 = vsub.s32 0, %v250
    %v252 = vrot.slane %v248, %v251
    %v253 = vlaneseq
    %v254 = vshrl.u32 %v253, 7
    %v255 = vsub.s32 4, %v254
    %v256 = vrot.slane %v248, %v255
    %vm257 = vcmp.ne.s16.totalorder %v252, 0
    %vm258 = vcmp.ne.s16.totalorder %v256, 0
    %v259 = vsel %vm257, %v188, 0
    %v260 = vsel %vm258, %v189, 0
    %v261 = vsel %vm257, %v190, 0
    %v262 = vsel %vm258, %v191, 0
    %267 = vrot.lane.b32.xlu0 %v237, 17
    %v268 = vpop.permute.xlu0 %267
    %269 = vrot.lane.b32.xlu0 %v238, 17
    %v270 = vpop.permute.xlu0 %269
    %271 = vrot.lane.b32.xlu0 %v239, 17
    %v272 = vpop.permute.xlu0 %271
    %273 = vrot.lane.b32.xlu0 %v240, 17
    %v274 = vpop.permute.xlu0 %273
    %vm275 = vcmask 138240
    %v276 = vsel %vm275, %v268, %v270
    %v277 = vsel %vm275, %v272, %v274
    %vm278 = vcmask 138240
    %v281 = vsel %vm278, 0, %v268
    %v283 = vsel %vm278, 0, %v272
    %288 = vrot.lane.b32.xlu0 %v188, 16
    %v289 = vpop.permute.xlu0 %288
    %290 = vrot.lane.b32.xlu0 %v189, 16
    %v291 = vpop.permute.xlu0 %290
    %292 = vrot.lane.b32.xlu0 %v190, 16
    %v293 = vpop.permute.xlu0 %292
    %294 = vrot.lane.b32.xlu0 %v191, 16
    %v295 = vpop.permute.xlu0 %294
    %vm296 = vcmask 130048
    %v297 = vsel %vm296, %v289, %v291
    %v298 = vsel %vm296, %v293, %v295
    %vm299 = vcmask 130048
    %v301 = vsel %vm299, 0, %v289
    %v303 = vsel %vm299, 0, %v293
    %308 = vrot.lane.b32.xlu0 %v259, 15
    %v309 = vpop.permute.xlu0 %308
    %310 = vrot.lane.b32.xlu0 %v260, 15
    %v311 = vpop.permute.xlu0 %310
    %312 = vrot.lane.b32.xlu0 %v261, 15
    %v313 = vpop.permute.xlu0 %312
    %314 = vrot.lane.b32.xlu0 %v262, 15
    %v315 = vpop.permute.xlu0 %314
    %vm316 = vcmask 121856
    %v317 = vsel %vm316, %v309, %v311
    %v318 = vsel %vm316, %v313, %v315
    %vm319 = vcmask 121856
    %v321 = vsel %vm319, 0, %v309
    %v323 = vsel %vm319, 0, %v313
    %324 = vrot.lane.b32.xlu0 %v237, 1
    %v325 = vpop.permute.xlu0 %324
    %326 = vrot.lane.b32.xlu0 %v238, 1
    %v327 = vpop.permute.xlu0 %326
    %328 = vrot.lane.b32.xlu0 %v239, 1
    %v329 = vpop.permute.xlu0 %328
    %330 = vrot.lane.b32.xlu0 %v240, 1
    %v331 = vpop.permute.xlu0 %330
    %vm332 = vcmask 7168
    %v333 = vsel %vm332, %v325, %v327
    %v334 = vsel %vm332, %v329, %v331
    %vm335 = vcmask 7168
    %v337 = vsel %vm335, 0, %v325
    %v339 = vsel %vm335, 0, %v329
    %340 = vrot.lane.b32.xlu0 %v259, 127
    %v341 = vpop.permute.xlu0 %340
    %342 = vrot.lane.b32.xlu0 %v260, 127
    %v343 = vpop.permute.xlu0 %342
    %344 = vrot.lane.b32.xlu0 %v261, 127
    %v345 = vpop.permute.xlu0 %344
    %346 = vrot.lane.b32.xlu0 %v262, 127
    %v347 = vpop.permute.xlu0 %346
    %vm348 = vcmask 1039360
    %v349 = vsel %vm348, %v341, %v343
    %v350 = vsel %vm348, %v345, %v347
    %vm351 = vcmask 1039360
    %v353 = vsel %vm351, %v343, 0
    %v355 = vsel %vm351, %v347, 0
    %356 = vrot.lane.b32.xlu0 %v237, 113
    %v357 = vpop.permute.xlu0 %356
    %358 = vrot.lane.b32.xlu0 %v238, 113
    %v359 = vpop.permute.xlu0 %358
    %360 = vrot.lane.b32.xlu0 %v239, 113
    %v361 = vpop.permute.xlu0 %360
    %362 = vrot.lane.b32.xlu0 %v240, 113
    %v363 = vpop.permute.xlu0 %362
    %vm364 = vcmask 924672
    %v365 = vsel %vm364, %v357, %v359
    %v366 = vsel %vm364, %v361, %v363
    %vm367 = vcmask 924672
    %v369 = vsel %vm367, %v359, 0
    %v371 = vsel %vm367, %v363, 0
    %372 = vrot.lane.b32.xlu0 %v188, 112
    %v373 = vpop.permute.xlu0 %372
    %374 = vrot.lane.b32.xlu0 %v189, 112
    %v375 = vpop.permute.xlu0 %374
    %376 = vrot.lane.b32.xlu0 %v190, 112
    %v377 = vpop.permute.xlu0 %376
    %378 = vrot.lane.b32.xlu0 %v191, 112
    %v379 = vpop.permute.xlu0 %378
    %vm380 = vcmask 916480
    %v381 = vsel %vm380, %v373, %v375
    %v382 = vsel %vm380, %v377, %v379
    %vm383 = vcmask 916480
    %v385 = vsel %vm383, %v375, 0
    %v387 = vsel %vm383, %v379, 0
    %388 = vrot.lane.b32.xlu0 %v259, 111
    %v389 = vpop.permute.xlu0 %388
    %390 = vrot.lane.b32.xlu0 %v260, 111
    %v391 = vpop.permute.xlu0 %390
    %392 = vrot.lane.b32.xlu0 %v261, 111
    %v393 = vpop.permute.xlu0 %392
    %394 = vrot.lane.b32.xlu0 %v262, 111
    %v395 = vpop.permute.xlu0 %394
    %vm396 = vcmask 908288
    %v397 = vsel %vm396, %v389, %v391
    %v398 = vsel %vm396, %v393, %v395
    %vm399 = vcmask 908288
    %v401 = vsel %vm399, %v391, 0
    %v403 = vsel %vm399, %v395, 0
    %v406 = vrot.slane %v301, 4
    %v407 = vrot.slane %v297, 4
    %v408 = vrot.slane %v303, 4
    %v409 = vrot.slane %v298, 4
    %v412 = vrot.slane %v337, 4
    %v413 = vrot.slane %v333, 4
    %v414 = vrot.slane %v339, 4
    %v415 = vrot.slane %v334, 4
    %v418 = vrot.slane %v349, 4
    %v419 = vrot.slane %v353, 4
    %v420 = vrot.slane %v350, 4
    %v421 = vrot.slane %v355, 4
    %v424 = vrot.slane %v381, 4
    %v425 = vrot.slane %v385, 4
    %v426 = vrot.slane %v382, 4
    %v427 = vrot.slane %v387, 4
    %vm428 = vcmask 1043456
    %v430 = vsel %vm428, %v281, %v406
    %v434 = vsel %vm428, %v276, %v407
    %v437 = vsel %vm428, %v283, %v408
    %v441 = vsel %vm428, %v277, %v409
    %v444 = vsel %vm428, %v321, %v412
    %v448 = vsel %vm428, %v317, %v413
    %v451 = vsel %vm428, %v323, %v414
    %v455 = vsel %vm428, %v318, %v415
    %v459 = vsel %vm428, %v188, %v418
    %v463 = vsel %vm428, %v189, %v419
    %v467 = vsel %vm428, %v190, %v420
    %v471 = vsel %vm428, %v191, %v421
    %v475 = vsel %vm428, %v365, %v424
    %v478 = vsel %vm428, %v369, %v425
    %v482 = vsel %vm428, %v366, %v426
    %v485 = vsel %vm428, %v371, %v427
    %v487 = vld [vmem:[%s2] sm:$0xf]
    %vm488 = vcmask 588800
    %v490 = vsel %vm488, %v487, 0
    %v493 = vsel %vm428, %v397, 0
    %v495 = vsel %vm428, %v401, 0
    %497 = vmatprep.subr.bf16.mxu0 0
    %498 = vmatpush1.bf16.msra.mxu0 0
    %499 = vmatprep.subr.bf16.mxu0 0
    %500 = vmatpush1.bf16.msra.mxu0 0
    %501 = vmatprep.subr.bf16.mxu0 0
    %502 = vmatpush1.bf16.msra.mxu0 0
    %503 = vmatprep.subr.bf16.mxu0 %v495
    %504 = vmatpush1.bf16.msra.mxu0 %v493
    %505 = vmatprep.subr.bf16.mxu0 %v478
    %506 = vmatpush1.bf16.msra.mxu0 %v475
    %507 = vmatprep.subr.bf16.mxu0 %v463
    %508 = vmatpush1.bf16.msra.mxu0 %v459
    %509 = vmatprep.subr.bf16.mxu0 %v448
    %510 = vmatpush1.bf16.msra.mxu0 %v444
    %511 = vmatprep.subr.bf16.mxu0 %v434
    %512 = vmatpush1.bf16.msra.mxu0 %v430
    %513 = vmatprep.subr.bf16.mxu0 0
    %514 = vmatpush2.bf16.msra.mxu0 0
    %515 = vmatprep.subr.bf16.mxu0 0
    %516 = vmatpush2.bf16.msra.mxu0 0
    %517 = vmatprep.subr.bf16.mxu0 0
    %518 = vmatpush2.bf16.msra.mxu0 0
    %519 = vmatprep.subr.bf16.mxu0 0
    %520 = vmatpush2.bf16.msra.mxu0 0
    %521 = vmatprep.subr.bf16.mxu0 0
    %522 = vmatpush2.bf16.msra.mxu0 0
    %523 = vmatprep.subr.bf16.mxu0 0
    %524 = vmatpush2.bf16.msra.mxu0 0
    %525 = vmatprep.subr.bf16.mxu0 0
    %526 = vmatpush2.bf16.msra.mxu0 0
    %527 = vmatprep.subr.bf16.mxu0 0
    %528 = vmatpush2.bf16.msra.mxu0 0
    %529 = vmatprep.mubr.bf16.mxu0 0
    %530 = vmatmul.mubr.bf16.gmra.mxu0 %v490
    %v531 = vpop.f32.mrf.mxu0
    %v532 = vadd.f32 0.0, %v531
    %v533 = vpop.f32.mrf.mxu0
    %v534 = vadd.f32 0.0, %v533
    %v535 = vpop.f32.mrf.mxu0
    %v536 = vpop.f32.mrf.mxu0
    %537 = vdwg.mxu0
    %v539 = vsel %vm428, %v398, 0
    %v541 = vsel %vm428, %v403, 0
    %543 = vmatprep.subr.bf16.mxu0 0
    %544 = vmatpush1.bf16.msra.mxu0 0
    %545 = vmatprep.subr.bf16.mxu0 0
    %546 = vmatpush1.bf16.msra.mxu0 0
    %547 = vmatprep.subr.bf16.mxu0 0
    %548 = vmatpush1.bf16.msra.mxu0 0
    %549 = vmatprep.subr.bf16.mxu0 %v541
    %550 = vmatpush1.bf16.msra.mxu0 %v539
    %551 = vmatprep.subr.bf16.mxu0 %v485
    %552 = vmatpush1.bf16.msra.mxu0 %v482
    %553 = vmatprep.subr.bf16.mxu0 %v471
    %554 = vmatpush1.bf16.msra.mxu0 %v467
    %555 = vmatprep.subr.bf16.mxu0 %v455
    %556 = vmatpush1.bf16.msra.mxu0 %v451
    %557 = vmatprep.subr.bf16.mxu0 %v441
    %558 = vmatpush1.bf16.msra.mxu0 %v437
    %559 = vmatprep.subr.bf16.mxu0 0
    %560 = vmatpush2.bf16.msra.mxu0 0
    %561 = vmatprep.subr.bf16.mxu0 0
    %562 = vmatpush2.bf16.msra.mxu0 0
    %563 = vmatprep.subr.bf16.mxu0 0
    %564 = vmatpush2.bf16.msra.mxu0 0
    %565 = vmatprep.subr.bf16.mxu0 0
    %566 = vmatpush2.bf16.msra.mxu0 0
    %567 = vmatprep.subr.bf16.mxu0 0
    %568 = vmatpush2.bf16.msra.mxu0 0
    %569 = vmatprep.subr.bf16.mxu0 0
    %570 = vmatpush2.bf16.msra.mxu0 0
    %571 = vmatprep.subr.bf16.mxu0 0
    %572 = vmatpush2.bf16.msra.mxu0 0
    %573 = vmatprep.subr.bf16.mxu0 0
    %574 = vmatpush2.bf16.msra.mxu0 0
    %575 = vmatprep.mubr.bf16.mxu0 0
    %576 = vmatmul.mubr.bf16.gmra.mxu0 %v490
    %v577 = vpop.f32.mrf.mxu0
    %v578 = vadd.f32 0.0, %v577
    %v579 = vpop.f32.mrf.mxu0
    %v580 = vadd.f32 0.0, %v579
    %v581 = vpop.f32.mrf.mxu0
    %v582 = vpop.f32.mrf.mxu0
    %583 = vdwg.mxu0
    %v584 = vadd.f32 %v532, %v534
    %v585 = vadd.f32 %v584, %v578
    %v586 = vadd.f32 %v585, %v580
    %587 = vadd.xlane.f32.xlu0 %v586
    %v588 = vpop.xlane.xlu0 %587
    %v589 = vmul.f32 %v532, %v532
    %v590 = vmul.f32 %v534, %v534
    %v591 = vmul.f32 %v578, %v578
    %v592 = vmul.f32 %v580, %v580
    %v593 = vadd.f32 %v589, %v590
    %v594 = vadd.f32 %v593, %v591
    %v595 = vadd.f32 %v594, %v592
    %596 = vadd.xlane.f32.xlu0 %v595
    %v597 = vpop.xlane.xlu0 %596
    %v598 = vmul.f32 %v588, 0.001953125
    %v599 = vmul.f32 %v597, 0.001953125
    %v600 = vmul.f32 %v598, %v598
    %v601 = vsub.f32 %v599, %v600
    %v602 = vmax.f32 %v601, 0.0
    %v603 = vsub.f32 %v532, %v598
    %v604 = vsub.f32 %v534, %v598
    %v605 = vsub.f32 %v578, %v598
    %v606 = vsub.f32 %v580, %v598
    %v607 = vadd.f32 %v602, 1e-05
    %v608 = vrsqrt.pop %v607
    %v609 = vmul.f32 %v603, %v608
    %v610 = vmul.f32 %v604, %v608
    %v611 = vmul.f32 %v605, %v608
    %v612 = vmul.f32 %v606, %v608
    %vm613 = vcmp.gt.f32.partialorder %v609, 0.0
    %vm614 = vcmp.gt.f32.partialorder %v610, 0.0
    %vm615 = vcmp.gt.f32.partialorder %v611, 0.0
    %vm616 = vcmp.gt.f32.partialorder %v612, 0.0
    %v617 = vmul.f32 %v609, 0.01
    %v618 = vmul.f32 %v610, 0.01
    %v619 = vmul.f32 %v611, 0.01
    %v620 = vmul.f32 %v612, 0.01
    %v621 = vsel %vm613, %v609, %v617
    %v622 = vsel %vm614, %v610, %v618
    %v623 = vsel %vm615, %v611, %v619
    %v624 = vsel %vm616, %v612, %v620
    %v625 = vld [vmem:[%s3] sm:$0x3]
    %v626 = vpack.c.bf16 %v621, %v621
    %v627 = vpack.c.bf16 %v622, %v622
    %v628 = vpack.c.bf16 %v623, %v623
    %v629 = vpack.c.bf16 %v624, %v624
    %vm630 = vcmask 64512
    %v632 = vsel %vm630, %v625, 0
    %v635 = vsel %vm428, %v626, 0
    %v638 = vsel %vm428, %v627, 0
    %640 = vmatprep.subr.bf16.mxu0 0
    %641 = vmatpush1.bf16.msra.mxu0 0
    %642 = vmatprep.subr.bf16.mxu0 0
    %643 = vmatpush1.bf16.msra.mxu0 0
    %644 = vmatprep.subr.bf16.mxu0 0
    %645 = vmatpush1.bf16.msra.mxu0 0
    %646 = vmatprep.subr.bf16.mxu0 0
    %647 = vmatpush1.bf16.msra.mxu0 0
    %648 = vmatprep.subr.bf16.mxu0 0
    %649 = vmatpush1.bf16.msra.mxu0 0
    %650 = vmatprep.subr.bf16.mxu0 0
    %651 = vmatpush1.bf16.msra.mxu0 0
    %652 = vmatprep.subr.bf16.mxu0 0
    %653 = vmatpush1.bf16.msra.mxu0 0
    %654 = vmatprep.subr.bf16.mxu0 %v638
    %655 = vmatpush1.bf16.msra.mxu0 %v635
    %656 = vmatprep.subr.bf16.mxu0 0
    %657 = vmatpush2.bf16.msra.mxu0 0
    %658 = vmatprep.subr.bf16.mxu0 0
    %659 = vmatpush2.bf16.msra.mxu0 0
    %660 = vmatprep.subr.bf16.mxu0 0
    %661 = vmatpush2.bf16.msra.mxu0 0
    %662 = vmatprep.subr.bf16.mxu0 0
    %663 = vmatpush2.bf16.msra.mxu0 0
    %664 = vmatprep.subr.bf16.mxu0 0
    %665 = vmatpush2.bf16.msra.mxu0 0
    %666 = vmatprep.subr.bf16.mxu0 0
    %667 = vmatpush2.bf16.msra.mxu0 0
    %668 = vmatprep.subr.bf16.mxu0 0
    %669 = vmatpush2.bf16.msra.mxu0 0
    %670 = vmatprep.subr.bf16.mxu0 0
    %671 = vmatpush2.bf16.msra.mxu0 0
    %672 = vmatprep.mubr.bf16.mxu0 0
    %673 = vmatmul.mubr.bf16.gmra.mxu0 %v632
    %v674 = vpop.f32.mrf.mxu0
    %v675 = vadd.f32 0.0, %v674
    %v676 = vpop.f32.mrf.mxu0
    %v677 = vadd.f32 0.0, %v676
    %v678 = vpop.f32.mrf.mxu0
    %v679 = vpop.f32.mrf.mxu0
    %680 = vdwg.mxu0
    %v682 = vsel %vm428, %v628, 0
    %v685 = vsel %vm428, %v629, 0
    %687 = vmatprep.subr.bf16.mxu0 0
    %688 = vmatpush1.bf16.msra.mxu0 0
    %689 = vmatprep.subr.bf16.mxu0 0
    %690 = vmatpush1.bf16.msra.mxu0 0
    %691 = vmatprep.subr.bf16.mxu0 0
    %692 = vmatpush1.bf16.msra.mxu0 0
    %693 = vmatprep.subr.bf16.mxu0 0
    %694 = vmatpush1.bf16.msra.mxu0 0
    %695 = vmatprep.subr.bf16.mxu0 0
    %696 = vmatpush1.bf16.msra.mxu0 0
    %697 = vmatprep.subr.bf16.mxu0 0
    %698 = vmatpush1.bf16.msra.mxu0 0
    %699 = vmatprep.subr.bf16.mxu0 0
    %700 = vmatpush1.bf16.msra.mxu0 0
    %701 = vmatprep.subr.bf16.mxu0 %v685
    %702 = vmatpush1.bf16.msra.mxu0 %v682
    %703 = vmatprep.subr.bf16.mxu0 0
    %704 = vmatpush2.bf16.msra.mxu0 0
    %705 = vmatprep.subr.bf16.mxu0 0
    %706 = vmatpush2.bf16.msra.mxu0 0
    %707 = vmatprep.subr.bf16.mxu0 0
    %708 = vmatpush2.bf16.msra.mxu0 0
    %709 = vmatprep.subr.bf16.mxu0 0
    %710 = vmatpush2.bf16.msra.mxu0 0
    %711 = vmatprep.subr.bf16.mxu0 0
    %712 = vmatpush2.bf16.msra.mxu0 0
    %713 = vmatprep.subr.bf16.mxu0 0
    %714 = vmatpush2.bf16.msra.mxu0 0
    %715 = vmatprep.subr.bf16.mxu0 0
    %716 = vmatpush2.bf16.msra.mxu0 0
    %717 = vmatprep.subr.bf16.mxu0 0
    %718 = vmatpush2.bf16.msra.mxu0 0
    %719 = vmatprep.mubr.bf16.mxu0 0
    %720 = vmatmul.mubr.bf16.gmra.mxu0 %v632
    %v721 = vpop.f32.mrf.mxu0
    %v722 = vadd.f32 0.0, %v721
    %v723 = vpop.f32.mrf.mxu0
    %v724 = vadd.f32 0.0, %v723
    %v725 = vpop.f32.mrf.mxu0
    %v726 = vpop.f32.mrf.mxu0
    %727 = vdwg.mxu0
    %v728 = vsel %vm428, %v675, 0.0
    %v729 = vsel %vm428, %v677, 0.0
    %v730 = vadd.f32 %v728, %v729
    %v731 = vsel %vm428, %v722, 0.0
    %v732 = vadd.f32 %v730, %v731
    %v733 = vsel %vm428, %v724, 0.0
    %v734 = vadd.f32 %v732, %v733
    %735 = vadd.xlane.f32.xlu0 %v734
    %v736 = vpop.xlane.xlu0 %735
    %v737 = vmul.f32 %v675, %v675
    %v738 = vmul.f32 %v677, %v677
    %v739 = vmul.f32 %v722, %v722
    %v740 = vmul.f32 %v724, %v724
    %v741 = vsel %vm428, %v737, 0.0
    %v742 = vsel %vm428, %v738, 0.0
    %v743 = vadd.f32 %v741, %v742
    %v744 = vsel %vm428, %v739, 0.0
    %v745 = vadd.f32 %v743, %v744
    %v746 = vsel %vm428, %v740, 0.0
    %v747 = vadd.f32 %v745, %v746
    %748 = vadd.xlane.f32.xlu0 %v747
    %v749 = vpop.xlane.xlu0 %748
    %v750 = vmul.f32 %v736, 0.001953125
    %v751 = vmul.f32 %v749, 0.001953125
    %v752 = vmul.f32 %v750, %v750
    %v753 = vsub.f32 %v751, %v752
    %v754 = vmax.f32 %v753, 0.0
    %v755 = vsub.f32 %v675, %v750
    %v756 = vsub.f32 %v677, %v750
    %v757 = vsub.f32 %v722, %v750
    %v758 = vsub.f32 %v724, %v750
    %v759 = vadd.f32 %v754, 1e-05
    %v760 = vrsqrt.pop %v759
    %v761 = vmul.f32 %v755, %v760
    %v762 = vmul.f32 %v756, %v760
    %v763 = vmul.f32 %v757, %v760
    %v764 = vmul.f32 %v758, %v760
    %v769 = vcombine.low %v761, %v762
    %v770 = vcombine.low %v763, %v764
    %v773 = vadd.f32 %v35, %v769
    %v774 = vadd.f32 %v36, %v770
    %775 = vst [vmem:[#allocation5] sm:$0xff] %v773
    %776 = vst [vmem:[#allocation5 + $0x8] sm:$0xff] %v774
    // Predicated region
    $region22: #{tpu_custom_call.1} parent=1 // pred_check
      _
    $region23: #{tpu_custom_call.1} parent=1 // pred_check_branch
      %778 = sbr.rel (0) target = $region25
    $region24: #{tpu_custom_call.1} parent=1 // pred_region
      %s780 = ssub.s32 256, 256
      %781 = vsyncadd [#allocation4], %s780
      %s782 = sshll.u32 [#allocation5], 4
      %s783 = int_to_ptr.vmem [resolvable:$true] %s782
      %788 = dma.vmem_to_hbm [thread:$0]  %s783, 256, %s4, [#allocation4], 128, 128, 8
    $region25: #{tpu_custom_call.1} parent=1 // pred_fallthru
      _
    // Predicated region
    $region26: #{tpu_custom_call.1} parent=1 // pred_check
      _
    $region27: #{tpu_custom_call.1} parent=1 // pred_check_branch
      %790 = sbr.rel (0) target = $region29
    $region28: #{tpu_custom_call.1} parent=1 // pred_region
      %791 = dma.done [#allocation4], 256
    $region29: #{tpu_custom_call.1} parent=1 // pred_fallthru
      _
    %792 = vsyncpa [#allocation3], 1
    %793 = vsyncpa [#allocation4], 1

</llo_original>
